<compile_context>
chip_gen: v7x
topology: tpu7x:2x2x1
jax: 0.10.0
libtpu: 0.0.40
codegen_flags: <defaults>
</compile_context>

<pallas_src>
import math
import functools

import jax
import jax.numpy as jnp
from jax.experimental import pallas as pl
from jax.experimental.pallas import tpu as pltpu


def _round_up(a, b):
    return ((a + b - 1) // b) * b


def _modifier_kernel(*refs, poly_degree, apply_relu, has_bias, fused,
                     c_valid, c_pad, chunk_rows, compute_dtype):
    # Ref layout (leading G axis squeezed out by the BlockSpecs):
    #   x_ref : (C, TM)                     input dtype
    #   w_ref : (O, C8*P)  if fused else (P, O, C)   compute dtype
    #   b_ref : (O, 1)                      (only if has_bias)
    #   o_ref : (O, TM)                     input dtype
    #   xp_ref: (C8*P, TM) compute-dtype scratch (only if fused)
    x_ref = refs[0]
    w_ref = refs[1]
    i = 2
    b_ref = None
    if has_bias:
        b_ref = refs[i]
        i += 1
    o_ref = refs[i]
    i += 1
    xp_ref = refs[i] if fused else None

    if fused:
        tm = x_ref.shape[-1]
        # Build the stacked powers [x, x^2, ..., x^P] in sublane chunks so the
        # live vreg state stays bounded for large C (no spills).
        for c0 in range(0, c_valid, chunk_rows):
            cc = min(chunk_rows, c_valid - c0)
            xc = x_ref[pl.ds(c0, cc), :].astype(compute_dtype)
            xp = xc
            xp_ref[pl.ds(c0, cc), :] = xp
            for p in range(1, poly_degree):
                xp = xp * xc
                xp_ref[pl.ds(p * c_pad + c0, cc), :] = xp
        # Zero the alignment-padding rows every step (the matching weight
        # columns are zero, but uninitialized VMEM could hold NaNs).
        if c_pad > c_valid:
            pad = c_pad - c_valid
            zeros = jnp.zeros((pad, tm), compute_dtype)
            for p in range(poly_degree):
                xp_ref[pl.ds(p * c_pad + c_valid, pad), :] = zeros
        # Single MXU matmul with K = C8*P, f32 accumulation.
        acc = jnp.dot(w_ref[...], xp_ref[...],
                      preferred_element_type=jnp.float32)        # (O, TM)
    else:
        # Fallback: P accumulating dots with K = C (also the P == 1 path).
        x = x_ref[...].astype(compute_dtype)
        acc = jnp.zeros(o_ref.shape, jnp.float32)
        xp = x
        for p in range(poly_degree):
            acc = acc + jnp.dot(w_ref[p], xp,
                                preferred_element_type=jnp.float32)
            if p + 1 < poly_degree:
                xp = xp * x

    if has_bias:
        acc = acc + b_ref[...].astype(jnp.float32)                # (O,1) -> lanes
    if apply_relu:
        acc = jnp.maximum(acc, 0.0)
    o_ref[...] = acc.astype(o_ref.dtype)


@functools.partial(
    jax.jit,
    static_argnames=("polynomial_degree", "kernel_size", "block_m",
                     "fuse_powers", "vmem_budget_bytes"))
def modifier_forward(x, weight, bias=None, *, polynomial_degree, kernel_size,
                     block_m=8192, fuse_powers=True,
                     vmem_budget_bytes=20 * 1024 * 1024):
    """x: (N, C, H, W). weight: (1, kh, kw, C*P, O). bias: (1, O, kh, kw) or None."""
    kh, kw = kernel_size
    N, C, H, W = x.shape
    P = polynomial_degree
    O = weight.shape[-1]
    th, tw = H // kh, W // kw
    assert th * kh == H and tw * kw == W
    G = kh * kw
    M = N * th * tw

    # ---- dtype policy: bf16 in -> bf16 MXU operands (f32 accumulate); else f32.
    if x.dtype == jnp.bfloat16:
        compute_dtype = jnp.bfloat16
        sub_align = 16          # bf16 sublane packing
    else:
        compute_dtype = jnp.float32
        sub_align = 8
    out_dtype = x.dtype

    fused = fuse_powers and P > 1
    C8 = _round_up(C, sub_align) if fused else C
    K8 = C8 * P

    # ---- balanced M tiling under a VMEM budget -------------------------------
    x_item = jnp.dtype(x.dtype).itemsize
    comp_item = jnp.dtype(compute_dtype).itemsize
    bytes_per_col = 2 * (C + O) * x_item            # double-buffered x / out tiles
    if fused:
        bytes_per_col += K8 * comp_item             # resident power-stack scratch
    tm_cap = (vmem_budget_bytes // bytes_per_col) // 128 * 128
    tm_cap = max(128, min(block_m, tm_cap))
    num_m = pl.cdiv(M, tm_cap)
    if G * num_m < 4:                               # v7x: give both TCs work
        num_m = min(pl.cdiv(M, 128), max(num_m, pl.cdiv(4, G)))
    TM = _round_up(pl.cdiv(M, num_m), 128)
    M_pad = TM * num_m

    # ---- residue-class regroup (lane-dense): xg[g, c, m] ---------------------
    #   g = (h%kh)*kw + (w%kw),  m = n*th*tw + (h//kh)*tw + (w//kw)
    # TODO(synk): replace with in-kernel strided DMA gather/scatter (see header).
    xg = x.reshape(N, C, th, kh, tw, kw)
    xg = xg.transpose(3, 5, 1, 0, 2, 4).reshape(G, C, M)
    if M_pad != M:
        xg = jnp.pad(xg, ((0, 0), (0, 0), (0, M_pad - M)))

    # ---- weights --------------------------------------------------------------
    if fused:
        # (1,kh,kw,C*P,O) -> (kh,kw,P,C,O) -> pad C -> (G, O, P*C8), K' = p*C8 + c
        w5 = weight.reshape(kh, kw, P, C, O)
        if C8 != C:
            w5 = jnp.pad(w5, ((0, 0), (0, 0), (0, 0), (0, C8 - C), (0, 0)))
        wg = (w5.transpose(0, 1, 4, 2, 3)
                .reshape(G, O, K8)
                .astype(compute_dtype))
        w_spec = pl.BlockSpec((None, O, K8), lambda g, m: (g, 0, 0))
    else:
        # (1,kh,kw,C*P,O) -> (G, P, O, C)
        wg = (weight.reshape(kh, kw, P, C, O)
                    .transpose(0, 1, 2, 4, 3)
                    .reshape(G, P, O, C)
                    .astype(compute_dtype))
        w_spec = pl.BlockSpec((None, P, O, C), lambda g, m: (g, 0, 0, 0))

    has_bias = bias is not None
    in_specs = [
        pl.BlockSpec((None, C, TM), lambda g, m: (g, 0, m)),   # streamed x tile
        w_spec,                                                # resident per g
    ]
    args = [xg, wg]
    if has_bias:
        bg = bias.reshape(O, kh, kw).transpose(1, 2, 0).reshape(G, O, 1)
        in_specs.append(pl.BlockSpec((None, O, 1), lambda g, m: (g, 0, 0)))
        args.append(bg)

    scratch_shapes = []
    if fused:
        scratch_shapes.append(pltpu.VMEM((K8, TM), compute_dtype))

    kernel = functools.partial(
        _modifier_kernel,
        poly_degree=P,
        apply_relu=(P == 1),
        has_bias=has_bias,
        fused=fused,
        c_valid=C,
        c_pad=C8,
        chunk_rows=sub_align,
        compute_dtype=compute_dtype,
    )

    cost = pl.CostEstimate(
        flops=int(2 * G * M_pad * K8 * O + G * M_pad * C * max(P - 1, 0)),
        transcendentals=0,
        bytes_accessed=int(G * M_pad * (C + O) * x_item
                           + wg.size * jnp.dtype(wg.dtype).itemsize
                           + (G * O * jnp.dtype(bias.dtype).itemsize
                              if has_bias else 0)),
    )

    out = pl.pallas_call(
        kernel,
        out_shape=jax.ShapeDtypeStruct((G, O, M_pad), out_dtype),
        grid=(G, num_m),
        in_specs=in_specs,
        out_specs=pl.BlockSpec((None, O, TM), lambda g, m: (g, 0, m)),
        scratch_shapes=scratch_shapes,
        compiler_params=pltpu.CompilerParams(
            dimension_semantics=("parallel", "parallel"),
            vmem_limit_bytes=48 * 1024 * 1024,
        ),
        cost_estimate=cost,
    )(*args)

    # Scatter residue classes back to NCHW.
    out = out[:, :, :M]
    out = out.reshape(kh, kw, O, N, th, tw)
    out = out.transpose(3, 2, 4, 0, 5, 1).reshape(N, O, H, W)
    return out


def modifier_reference(x, weight, bias, polynomial_degree, kernel_size):
    """Pure-JAX transcription of the PyTorch forward (for verification)."""
    kh, kw = kernel_size
    N, C, H, W = x.shape
    th, tw = H // kh, W // kw
    if polynomial_degree > 1:
        exp_x = [x]
        for _ in range(polynomial_degree - 1):
            exp_x.append(exp_x[-1] * x)
        xx = jnp.concatenate(exp_x, axis=1)
    else:
        xx = x
    xx = xx.transpose(0, 2, 3, 1)[..., None, :]          # (N, H, W, 1, C*P)
    wt = jnp.tile(weight, (1, th, tw, 1, 1))             # (1, H, W, C*P, O)
    y = jnp.matmul(xx, wt)[..., 0, :].transpose(0, 3, 1, 2)
    if bias is not None:
        bt = jnp.tile(bias, (1, 1, th, tw))
        y = y + bt
    if polynomial_degree == 1:
        y = jax.nn.relu(y)
    return y


def _make_params(key, C, O, P, kh, kw, with_bias):
    k_w, k_b = jax.random.split(key)
    fan_in = kh * (kw * (C * P) * O)  # PyTorch fan_in for this weight shape
    bound = 1.0 / math.sqrt(fan_in)
    weight = jax.random.uniform(k_w, (1, kh, kw, C * P, O), jnp.float32,
                                -bound, bound)
    bias = (jax.random.uniform(k_b, (1, O, kh, kw), jnp.float32, -bound, bound)
            if with_bias else None)
    return weight, bias


def _run_case(key, *, N, C, O, P, kh, kw, H, W, with_bias,
              dtype=jnp.float32, block_m=8192, fuse_powers=True,
              atol=1e-4, rtol=1e-4):
    k_p, k_x = jax.random.split(key)
    weight, bias = _make_params(k_p, C, O, P, kh, kw, with_bias)
    x = jax.random.normal(k_x, (N, C, H, W), jnp.float32)
    x_in = x.astype(dtype)
    out = modifier_forward(x_in, weight, bias, polynomial_degree=P,
                           kernel_size=(kh, kw), block_m=block_m,
                           fuse_powers=fuse_powers)
    out = jax.block_until_ready(out)
    assert out.shape == (N, O, H, W), out.shape
    assert out.dtype == x_in.dtype, out.dtype
    if dtype == jnp.bfloat16:
        # Reference sees the same rounded operands the kernel sees.
        ref = modifier_reference(x_in.astype(jnp.float32),
                                 weight.astype(jnp.bfloat16).astype(jnp.float32),
                                 bias, P, (kh, kw))
    else:
        ref = modifier_reference(x, weight, bias, P, (kh, kw))
    err = jnp.max(jnp.abs(out.astype(jnp.float32) - ref))
    assert jnp.allclose(out.astype(jnp.float32), ref, atol=atol, rtol=rtol), (
        f"mismatch vs reference (P={P}, C={C}, O={O}, bias={with_bias}, "
        f"dtype={dtype}, max_err={err})")


if __name__ == "__main__":
    key = jax.random.PRNGKey(0)
    ks = jax.random.split(key, 6)

    # 1) P=3, C=4 (fused path with C8=8 scratch padding), bias.
    _run_case(ks[0], N=2, C=4, O=8, P=3, kh=3, kw=3, H=12, W=12, with_bias=True)

    # 2) P=1 (ReLU path, single-dot fallback structure), no bias.
    _run_case(ks[1], N=2, C=4, O=8, P=1, kh=3, kw=3, H=12, W=12, with_bias=False)

    # 3) P=2, C multiple of the sublane alignment (fused, no padding).
    _run_case(ks[2], N=2, C=8, O=16, P=2, kh=2, kw=2, H=8, W=8, with_bias=True)

    # 4) Multi-tile M with tail padding + non-aligned C (small block_m to force
    #    num_m > 1 and exercise the balanced-TM logic).
    _run_case(ks[3], N=3, C=5, O=8, P=3, kh=3, kw=3, H=24, W=24, with_bias=True,
              block_m=128)

    # 5) Opt-out of power fusion (P accumulating dots fallback).
    _run_case(ks[4], N=2, C=4, O=8, P=3, kh=3, kw=3, H=12, W=12, with_bias=True,
              fuse_powers=False)

    # 6) bf16 inputs: bf16 MXU operands + bf16 scratch, f32 accumulation.
    _run_case(ks[5], N=2, C=8, O=8, P=2, kh=2, kw=2, H=8, W=8, with_bias=True,
              dtype=jnp.bfloat16, atol=3e-2, rtol=3e-2)

    print("KERNEL_OK")
</pallas_src>

<mosaic_0001>
module attributes {stable_mosaic.version = 11 : i64} {
  func.func @_modifier_kernel(%arg0: i32, %arg1: i32, %arg2: memref<1x4x128xf32, #tpu.memory_space<vmem>>, %arg3: memref<1x8x24xf32, #tpu.memory_space<vmem>>, %arg4: memref<1x8x1xf32, #tpu.memory_space<vmem>>, %arg5: memref<1x8x128xf32, #tpu.memory_space<vmem>>, %arg6: memref<24x128xf32, #tpu.memory_space<vmem>>) attributes {dimension_semantics = [#tpu.dimension_semantics<parallel>, #tpu.dimension_semantics<parallel>], iteration_bounds = array<i64: 9, 1>, scalar_prefetch = 0 : i64, scratch_operands = 1 : i64, tpu.core_type = #tpu.core_type<tc>, window_params = [{transform_indices = @transform_0, window_bounds = array<i64: 1, 4, 128>}, {transform_indices = @transform_1, window_bounds = array<i64: 1, 8, 24>}, {transform_indices = @transform_2, window_bounds = array<i64: 1, 8, 1>}, {transform_indices = @transform_3, window_bounds = array<i64: 1, 8, 128>}]} {
    %c0 = arith.constant 0 : index
    %c0_0 = arith.constant 0 : index
    %c0_1 = arith.constant 0 : index
    %0 = vector.load %arg2[%c0, %c0_0, %c0_1] : memref<1x4x128xf32, #tpu.memory_space<vmem>>, vector<1x4x128xf32>
    %1 = vector.shape_cast %0 : vector<1x4x128xf32> to vector<4x128xf32>
    %c0_2 = arith.constant 0 : index
    %c0_3 = arith.constant 0 : index
    %2 = vector.load %arg6[%c0_2, %c0_3] : memref<24x128xf32, #tpu.memory_space<vmem>>, vector<4x128xf32>
    tpu.vector_store %arg6[%c0_2, %c0_3], %1 {strides = array<i32>} : memref<24x128xf32, #tpu.memory_space<vmem>>, vector<4x128xf32>,
    %3 = arith.mulf %1, %1 : vector<4x128xf32>
    %c8 = arith.constant 8 : index
    %c0_4 = arith.constant 0 : index
    %4 = vector.load %arg6[%c8, %c0_4] : memref<24x128xf32, #tpu.memory_space<vmem>>, vector<4x128xf32>
    tpu.vector_store %arg6[%c8, %c0_4], %3 {strides = array<i32>} : memref<24x128xf32, #tpu.memory_space<vmem>>, vector<4x128xf32>,
    %5 = arith.mulf %3, %1 : vector<4x128xf32>
    %c16 = arith.constant 16 : index
    %c0_5 = arith.constant 0 : index
    %6 = vector.load %arg6[%c16, %c0_5] : memref<24x128xf32, #tpu.memory_space<vmem>>, vector<4x128xf32>
    tpu.vector_store %arg6[%c16, %c0_5], %5 {strides = array<i32>} : memref<24x128xf32, #tpu.memory_space<vmem>>, vector<4x128xf32>,
    %cst = arith.constant 0.000000e+00 : f32
    %7 = vector.broadcast %cst : f32 to vector<4x128xf32>
    %c4 = arith.constant 4 : index
    %c0_6 = arith.constant 0 : index
    %8 = vector.load %arg6[%c4, %c0_6] : memref<24x128xf32, #tpu.memory_space<vmem>>, vector<4x128xf32>
    tpu.vector_store %arg6[%c4, %c0_6], %7 {strides = array<i32>} : memref<24x128xf32, #tpu.memory_space<vmem>>, vector<4x128xf32>,
    %c12 = arith.constant 12 : index
    %c0_7 = arith.constant 0 : index
    %9 = vector.load %arg6[%c12, %c0_7] : memref<24x128xf32, #tpu.memory_space<vmem>>, vector<4x128xf32>
    tpu.vector_store %arg6[%c12, %c0_7], %7 {strides = array<i32>} : memref<24x128xf32, #tpu.memory_space<vmem>>, vector<4x128xf32>,
    %c20 = arith.constant 20 : index
    %c0_8 = arith.constant 0 : index
    %10 = vector.load %arg6[%c20, %c0_8] : memref<24x128xf32, #tpu.memory_space<vmem>>, vector<4x128xf32>
    tpu.vector_store %arg6[%c20, %c0_8], %7 {strides = array<i32>} : memref<24x128xf32, #tpu.memory_space<vmem>>, vector<4x128xf32>,
    %c0_9 = arith.constant 0 : index
    %c0_10 = arith.constant 0 : index
    %c0_11 = arith.constant 0 : index
    %11 = vector.load %arg3[%c0_9, %c0_10, %c0_11] : memref<1x8x24xf32, #tpu.memory_space<vmem>>, vector<1x8x24xf32>
    %12 = vector.shape_cast %11 : vector<1x8x24xf32> to vector<8x24xf32>
    %c0_12 = arith.constant 0 : index
    %c0_13 = arith.constant 0 : index
    %13 = vector.load %arg6[%c0_12, %c0_13] : memref<24x128xf32, #tpu.memory_space<vmem>>, vector<24x128xf32>
    %cst_14 = arith.constant dense<0.000000e+00> : vector<8x128xf32>
    %14 = tpu.matmul %12, %13, %cst_14 {dimension_numbers = #tpu.dot_dimension_numbers<[1], [0], [0], [1], [0, 0, 1, 1], [], []>} : vector<8x24xf32>, vector<24x128xf32>, vector<8x128xf32> -> vector<8x128xf32>
    %c0_15 = arith.constant 0 : index
    %c0_16 = arith.constant 0 : index
    %c0_17 = arith.constant 0 : index
    %15 = vector.load %arg4[%c0_15, %c0_16, %c0_17] : memref<1x8x1xf32, #tpu.memory_space<vmem>>, vector<1x8x1xf32>
    %16 = vector.shape_cast %15 : vector<1x8x1xf32> to vector<8x1xf32>
    %17 = vector.broadcast %16 : vector<8x1xf32> to vector<8x128xf32>
    %18 = arith.addf %14, %17 : vector<8x128xf32>
    %c0_18 = arith.constant 0 : index
    %c0_19 = arith.constant 0 : index
    %c0_20 = arith.constant 0 : index
    %19 = vector.load %arg5[%c0_18, %c0_19, %c0_20] : memref<1x8x128xf32, #tpu.memory_space<vmem>>, vector<1x8x128xf32>
    %20 = vector.shape_cast %19 : vector<1x8x128xf32> to vector<8x128xf32>
    %21 = vector.shape_cast %18 : vector<8x128xf32> to vector<1x8x128xf32>
    tpu.vector_store %arg5[%c0_18, %c0_19, %c0_20], %21 {strides = array<i32>} : memref<1x8x128xf32, #tpu.memory_space<vmem>>, vector<1x8x128xf32>,
    return
  }
  func.func @transform_0(%arg0: i32, %arg1: i32) -> (i32, i32, i32) {
    %c0_i32 = arith.constant 0 : i32
    %c0_i32_0 = arith.constant 0 : i32
    return %arg0, %c0_i32, %arg1 : i32, i32, i32
  }
  func.func @transform_1(%arg0: i32, %arg1: i32) -> (i32, i32, i32) {
    %c0_i32 = arith.constant 0 : i32
    %c0_i32_0 = arith.constant 0 : i32
    %c0_i32_1 = arith.constant 0 : i32
    return %arg0, %c0_i32, %c0_i32_0 : i32, i32, i32
  }
  func.func @transform_2(%arg0: i32, %arg1: i32) -> (i32, i32, i32) {
    %c0_i32 = arith.constant 0 : i32
    %c0_i32_0 = arith.constant 0 : i32
    %c0_i32_1 = arith.constant 0 : i32
    return %arg0, %c0_i32, %c0_i32_0 : i32, i32, i32
  }
  func.func @transform_3(%arg0: i32, %arg1: i32) -> (i32, i32, i32) {
    %c0_i32 = arith.constant 0 : i32
    %c0_i32_0 = arith.constant 0 : i32
    return %arg0, %c0_i32, %arg1 : i32, i32, i32
  }
}

</mosaic_0001>

<llo_original>
// kernel: modifier_forward.1
$region0: #{modifier_forward.1}
  #allocation0 [shape = 'u32[]', space=smem, size = 0x4, offset = 0x4, fixed_abs, tag = 'smem constant byte address 0x4 - core index']
  #allocation1 [shape = 'u32[144,128]{1,0:T(1,128)}', space=vmem, size = 0x12000, scoped, tag = 'internal scratch']
  #allocation2 [shape = 'f32[24,128]{1,0:T(8,128)}', space=vmem, size = 0x3000, scoped, tag = 'scratch operand']
  %s0 = inlined_call_operand.vmem [shape: f32[9,4,128], index: 0, kind: input, shape index: {}]
  %s1 = inlined_call_operand.vmem [shape: f32[9,8,24], index: 1, kind: input, shape index: {}]
  %s2 = inlined_call_operand.vmem [shape: f32[9,8,1], index: 2, kind: input, shape index: {}]
  %s3 = inlined_call_operand.vmem [shape: f32[9,8,128], index: 3, kind: output, shape index: {}]
  %s4 = sld [smem:[#allocation0]]
  $region45: #{modifier_forward.1} parent=0
    _
  %s6 = ssub.s32 1, %s4
  %s7 = scalar_select 0, %s6, %s4
  loop: start=0, step=1, limit=11
  $region2: #{modifier_forward.1} parent=0 // loop_pre_header
    _
  $region3: #{modifier_forward.1} parent=0 // loop_header
    %s9 = sphi 0, %s13
    %p10 = scmp.ge.s32.totalorder %s9, 11
    %s16 = sphi 0, %s28
    %s17 = sphi 0, %s24
    %s18 = sphi 0, %s16
    %s19 = sphi 0, %s17
    %s20 = sphi 0, %s18
    %s21 = sphi 0, %s19
    %s33 = sphi 0, %s35
    %s36 = sphi 0, %s33
    %s37 = sphi 0, %s36
    %s53 = sphi 0, %s37
    %s59 = sphi 0, %s61
    %s62 = sphi 0, %s59
    %s63 = sphi 0, %s62
    %s79 = sphi 0, %s63
    %s85 = sphi 0, %s87
    %s88 = sphi 0, %s85
    %s89 = sphi 0, %s88
    %s105 = sphi 0, %s89
    %s113 = sphi 0, %s115
    %s116 = sphi 0, %s113
    %s117 = sphi 0, %s116
    %s133 = sphi 0, %s117
  $region4: #{modifier_forward.1} parent=0 // loop_header_branch
    %12 = sbr.rel (%p10) target = $region8
  $region5: #{modifier_forward.1} parent=0 // loop_body
    %s14 = ssub.s32 %s9, 1
    %s15 = ssub.s32 %s9, 2
    %s22 = sadd.s32 1, %s17
    %p23 = scmp.ge.s32.totalorder %s22, 1
    %s24 = scalar_select %p23, 0, %s22
    %s25 = sadd.s32 1, %s16
    %s26 = scalar_select %p23, %s25, %s16
    %p27 = scmp.ge.s32.totalorder %s26, 9
    %s28 = scalar_select %p27, 0, %s26
    %s29 = ssub.s32 %s16, %s28
    %s30 = ssub.s32 %s17, %s24
    %s31 = sor.u32 %s29, %s30
    %p32 = scmp.eq.s32.totalorder %s31, 0
    %s34 = sadd.s32 %s33, 1
    %s35 = scalar_select %p32, %s33, %s34
    %p38 = pneg %p32
    %p39 = scmp.eq.s32.totalorder %s9, 8
    %p40 = por %p38, %p39
    %p41 = scmp.ne.s32.totalorder %s33, %s36
    %p42 = scmp.eq.s32.totalorder %s9, 0
    %p43 = por %p41, %p42
    %p44 = scmp.ne.s32.totalorder %s33, %s36
    %p45 = scmp.eq.s32.totalorder %s14, 8
    %p46 = por %p44, %p45
    %p47 = scmp.ne.s32.totalorder %s36, %s37
    %p48 = scmp.eq.s32.totalorder %s14, 0
    %p49 = por %p47, %p48
    %p50 = scmp.ne.s32.totalorder %s36, %s37
    %p51 = scmp.eq.s32.totalorder %s15, 8
    %p52 = por %p50, %p51
    %p54 = scmp.ne.s32.totalorder %s37, %s53
    %p55 = scmp.eq.s32.totalorder %s15, 0
    %p56 = por %p54, %p55
    %s57 = ssub.s32 %s16, %s28
    %p58 = scmp.eq.s32.totalorder %s57, 0
    %s60 = sadd.s32 %s59, 1
    %s61 = scalar_select %p58, %s59, %s60
    %p64 = pneg %p58
    %p65 = scmp.eq.s32.totalorder %s9, 8
    %p66 = por %p64, %p65
    %p67 = scmp.ne.s32.totalorder %s59, %s62
    %p68 = scmp.eq.s32.totalorder %s9, 0
    %p69 = por %p67, %p68
    %p70 = scmp.ne.s32.totalorder %s59, %s62
    %p71 = scmp.eq.s32.totalorder %s14, 8
    %p72 = por %p70, %p71
    %p73 = scmp.ne.s32.totalorder %s62, %s63
    %p74 = scmp.eq.s32.totalorder %s14, 0
    %p75 = por %p73, %p74
    %p76 = scmp.ne.s32.totalorder %s62, %s63
    %p77 = scmp.eq.s32.totalorder %s15, 8
    %p78 = por %p76, %p77
    %p80 = scmp.ne.s32.totalorder %s63, %s79
    %p81 = scmp.eq.s32.totalorder %s15, 0
    %p82 = por %p80, %p81
    %s83 = ssub.s32 %s16, %s28
    %p84 = scmp.eq.s32.totalorder %s83, 0
    %s86 = sadd.s32 %s85, 1
    %s87 = scalar_select %p84, %s85, %s86
    %p90 = pneg %p84
    %p91 = scmp.eq.s32.totalorder %s9, 8
    %p92 = por %p90, %p91
    %p93 = scmp.ne.s32.totalorder %s85, %s88
    %p94 = scmp.eq.s32.totalorder %s9, 0
    %p95 = por %p93, %p94
    %p96 = scmp.ne.s32.totalorder %s85, %s88
    %p97 = scmp.eq.s32.totalorder %s14, 8
    %p98 = por %p96, %p97
    %p99 = scmp.ne.s32.totalorder %s88, %s89
    %p100 = scmp.eq.s32.totalorder %s14, 0
    %p101 = por %p99, %p100
    %p102 = scmp.ne.s32.totalorder %s88, %s89
    %p103 = scmp.eq.s32.totalorder %s15, 8
    %p104 = por %p102, %p103
    %p106 = scmp.ne.s32.totalorder %s89, %s105
    %p107 = scmp.eq.s32.totalorder %s15, 0
    %p108 = por %p106, %p107
    %s109 = ssub.s32 %s16, %s28
    %s110 = ssub.s32 %s17, %s24
    %s111 = sor.u32 %s109, %s110
    %p112 = scmp.eq.s32.totalorder %s111, 0
    %s114 = sadd.s32 %s113, 1
    %s115 = scalar_select %p112, %s113, %s114
    %p118 = pneg %p112
    %p119 = scmp.eq.s32.totalorder %s9, 8
    %p120 = por %p118, %p119
    %p121 = scmp.ne.s32.totalorder %s113, %s116
    %p122 = scmp.eq.s32.totalorder %s9, 0
    %p123 = por %p121, %p122
    %p124 = scmp.ne.s32.totalorder %s113, %s116
    %p125 = scmp.eq.s32.totalorder %s14, 8
    %p126 = por %p124, %p125
    %p127 = scmp.ne.s32.totalorder %s116, %s117
    %p128 = scmp.eq.s32.totalorder %s14, 0
    %p129 = por %p127, %p128
    %p130 = scmp.ne.s32.totalorder %s116, %s117
    %p131 = scmp.eq.s32.totalorder %s15, 8
    %p132 = por %p130, %p131
    %p134 = scmp.ne.s32.totalorder %s117, %s133
    %p135 = scmp.eq.s32.totalorder %s15, 0
    %p136 = por %p134, %p135
    %p137 = scmp.le.s32.totalorder 1, %s9
    %p138 = scmp.lt.s32.totalorder %s9, 10
    %p139 = pnand %p137, %p138
    %p140 = pneg %p139
    // Predicated region
    $region9: #{modifier_forward.1} parent=5 // pred_check
      _
    $region10: #{modifier_forward.1} parent=5 // pred_check_branch
      %142 = sbr.rel (%p139) target = $region12
    $region11: #{modifier_forward.1} parent=5 // pred_region
      %s143 = ssub.s32 %s9, 1
    $region12: #{modifier_forward.1} parent=5 // pred_fallthru
      _
    %p144 = scmp.lt.s32.totalorder %s9, 9
    // Predicated region
    $region13: #{modifier_forward.1} parent=5 // pred_check
      %p145 = pneg %p144
    $region14: #{modifier_forward.1} parent=5 // pred_check_branch
      %147 = sbr.rel (%p145) target = $region16
    $region15: #{modifier_forward.1} parent=5 // pred_region
      // Predicated region
      $region17: #{modifier_forward.1} parent=15 // pred_check
        %p148 = pneg %p43
      $region18: #{modifier_forward.1} parent=15 // pred_check_branch
        %150 = sbr.rel (%p148) target = $region20
      $region19: #{modifier_forward.1} parent=15 // pred_region
        %p151 = scmp.lt.s32.totalorder %s16, 8
        %s152 = scalar_select %p151, %s16, 8
        %p153 = scmp.lt.s32.totalorder %s17, 0
        %s154 = scalar_select %p153, %s17, 0
        %s155 = sadd.s32 %s154, %s152
        %s156 = smul.addr %s155, 4
        %s157 = scalar_lea.vmem %s0, %s156
      $region20: #{modifier_forward.1} parent=15 // pred_fallthru
        _
      // Predicated region
      $region21: #{modifier_forward.1} parent=15 // pred_check
        %p158 = pneg %p69
      $region22: #{modifier_forward.1} parent=15 // pred_check_branch
        %160 = sbr.rel (%p158) target = $region24
      $region23: #{modifier_forward.1} parent=15 // pred_region
        %p161 = scmp.lt.s32.totalorder %s16, 8
        %s162 = scalar_select %p161, %s16, 8
        %s163 = smul.addr %s162, 8
        %s164 = scalar_lea.vmem %s1, %s163
      $region24: #{modifier_forward.1} parent=15 // pred_fallthru
        _
      // Predicated region
      $region25: #{modifier_forward.1} parent=15 // pred_check
        %p165 = pneg %p95
      $region26: #{modifier_forward.1} parent=15 // pred_check_branch
        %167 = sbr.rel (%p165) target = $region28
      $region27: #{modifier_forward.1} parent=15 // pred_region
        %p168 = scmp.lt.s32.totalorder %s16, 8
        %s169 = scalar_select %p168, %s16, 8
        %s170 = smul.addr %s169, 8
        %s171 = scalar_lea.vmem %s2, %s170
      $region28: #{modifier_forward.1} parent=15 // pred_fallthru
        _
    $region16: #{modifier_forward.1} parent=5 // pred_fallthru
      _
    %p172 = scmp.le.s32.totalorder 1, %s9
    %p173 = scmp.lt.s32.totalorder %s9, 10
    %p174 = pnand %p172, %p173
    %p175 = pneg %p174
    // Predicated region
    $region29: #{modifier_forward.1} parent=5 // pred_check
      _
    $region30: #{modifier_forward.1} parent=5 // pred_check_branch
      %177 = sbr.rel (%p174) target = $region32
    $region31: #{modifier_forward.1} parent=5 // pred_region
      %s178 = ssub.s32 %s9, 1
      %p179 = scmp.lt.s32.totalorder %s18, 8
      %s180 = scalar_select %p179, %s18, 8
      %p181 = scmp.lt.s32.totalorder %s19, 0
      %s182 = scalar_select %p181, %s19, 0
      %s183 = sadd.s32 %s182, %s180
      %s184 = smul.addr %s183, 4
      %s185 = scalar_lea.vmem %s0, %s184
      %p186 = pneg %p49
      %p187 = pneg %p46
      %p188 = scmp.lt.s32.totalorder %s18, 8
      %s189 = scalar_select %p188, %s18, 8
      %s190 = smul.addr %s189, 8
      %s191 = scalar_lea.vmem %s1, %s190
      %p192 = pneg %p75
      %p193 = pneg %p72
      %p194 = scmp.lt.s32.totalorder %s18, 8
      %s195 = scalar_select %p194, %s18, 8
      %s196 = smul.addr %s195, 8
      %s197 = scalar_lea.vmem %s2, %s196
      %p198 = pneg %p101
      %p199 = pneg %p98
      %p200 = pneg %p129
      %p201 = pneg %p126
      %p202 = scmp.lt.s32.totalorder %s18, 8
      %s203 = scalar_select %p202, %s18, 8
      %p204 = scmp.lt.s32.totalorder %s19, 0
      %s205 = scalar_select %p204, %s19, 0
      %s206 = sadd.s32 %s205, %s203
      %s207 = smul.addr %s206, 8
      %s208 = scalar_lea.vmem %s3, %s207
      %p209 = scmp.lt.s32.totalorder %s18, 8
      %s210 = scalar_select %p209, %s18, 8
      %p211 = scmp.lt.s32.totalorder %s19, 0
      %s212 = scalar_select %p211, %s19, 0
      %s213 = sadd.s32 %s212, %s210
      %s214 = smul.addr %s213, 4
      %s215 = scalar_lea.vmem %s0, %s214
      %p216 = scmp.lt.s32.totalorder %s18, 8
      %s217 = scalar_select %p216, %s18, 8
      %s218 = smul.addr %s217, 8
      %s219 = scalar_lea.vmem %s1, %s218
      %p220 = scmp.lt.s32.totalorder %s18, 8
      %s221 = scalar_select %p220, %s18, 8
      %s222 = smul.addr %s221, 8
      %s223 = scalar_lea.vmem %s2, %s222
      %p224 = scmp.lt.s32.totalorder %s18, 8
      %s225 = scalar_select %p224, %s18, 8
      %p226 = scmp.lt.s32.totalorder %s19, 0
      %s227 = scalar_select %p226, %s19, 0
      %s228 = sadd.s32 %s227, %s225
      %s229 = smul.addr %s228, 8
      %s230 = scalar_lea.vmem %s3, %s229
      %v231 = vld [vmem:[%s215] sm:$0xf]
      %232 = vst [vmem:[#allocation2] sm:$0xf] %v231
      %v233 = vmul.f32 %v231, %v231
      %234 = vst [vmem:[#allocation2 + $0x8] sm:$0xf] %v233
      %v235 = vmul.f32 %v233, %v231
      %236 = vst [vmem:[#allocation2 + $0x10] sm:$0xf] %v235
      %237 = vst [vmem:[#allocation2 + $0x4] sm:$0xf] 0.0
      %238 = vst [vmem:[#allocation2 + $0xc] sm:$0xf] 0.0
      %239 = vst [vmem:[#allocation2 + $0x14] sm:$0xf] 0.0
      %v240 = vld [vmem:[%s219] sm:$0xff]
      %v241 = vld [vmem:[#allocation2] sm:$0xff]
      %v242 = vld [vmem:[#allocation2 + $0x8] sm:$0xff]
      %v243 = vld [vmem:[#allocation2 + $0x10] sm:$0xff]
      %v244 = vld [vmem:[%s223] sm:$0xff]
      %246 = vset.pattern.permute.xlu0 0
      %247 = vperm.xlu0 %246, %v244
      %v248 = vpop.permute.xlu0 %247
      %vm250 = vcmask 195584
      %v252 = vsel %vm250, %v240, 0
      %254 = vmatprep.subr.mxu0 0.0
      %255 = vmatpush1.msra.mxu0 %v241
      %256 = vmatprep.subr.mxu0 0.0
      %257 = vmatpush1.msra.mxu0 %v242
      %258 = vmatprep.subr.mxu0 0.0
      %259 = vmatpush1.msra.mxu0 %v243
      %260 = vmatprep.subr.mxu0 0.0
      %261 = vmatpush1.msra.mxu0 0.0
      %262 = vmatprep.subr.mxu0 0.0
      %263 = vmatpush1.msra.mxu0 0.0
      %264 = vmatprep.subr.mxu0 0.0
      %265 = vmatpush1.msra.mxu0 0.0
      %266 = vmatprep.subr.mxu0 0.0
      %267 = vmatpush1.msra.mxu0 0.0
      %268 = vmatprep.subr.mxu0 0.0
      %269 = vmatpush1.msra.mxu0 0.0
      %270 = vmatprep.subr.mxu0 0.0
      %271 = vmatpush1.msra.mxu0 0.0
      %272 = vmatprep.subr.mxu0 0.0
      %273 = vmatpush1.msra.mxu0 0.0
      %274 = vmatprep.subr.mxu0 0.0
      %275 = vmatpush1.msra.mxu0 0.0
      %276 = vmatprep.subr.mxu0 0.0
      %277 = vmatpush1.msra.mxu0 0.0
      %278 = vmatprep.subr.mxu0 0.0
      %279 = vmatpush1.msra.mxu0 0.0
      %280 = vmatprep.subr.mxu0 0.0
      %281 = vmatpush1.msra.mxu0 0.0
      %282 = vmatprep.subr.mxu0 0.0
      %283 = vmatpush1.msra.mxu0 0.0
      %284 = vmatprep.subr.mxu0 0.0
      %285 = vmatpush1.msra.mxu0 0.0
      %286 = vmatprep.subr.mxu0 0.0
      %287 = vmatpush1.msra.mxu0 0.0
      %288 = vmatprep.subr.mxu0 0.0
      %289 = vmatpush1.msra.mxu0 0.0
      %290 = vmatprep.subr.mxu0 0.0
      %291 = vmatpush1.msra.mxu0 0.0
      %292 = vmatprep.subr.mxu0 0.0
      %293 = vmatpush1.msra.mxu0 0.0
      %294 = vmatprep.subr.mxu0 0.0
      %295 = vmatpush1.msra.mxu0 0.0
      %296 = vmatprep.subr.mxu0 0.0
      %297 = vmatpush1.msra.mxu0 0.0
      %298 = vmatprep.subr.mxu0 0.0
      %299 = vmatpush1.msra.mxu0 0.0
      %300 = vmatprep.subr.mxu0 0.0
      %301 = vmatpush1.msra.mxu0 0.0
      %302 = vmatprep.subr.mxu0 0.0
      %303 = vmatpush1.msra.mxu0 0.0
      %304 = vmatprep.subr.mxu0 0.0
      %305 = vmatpush1.msra.mxu0 0.0
      %306 = vmatprep.subr.mxu0 0.0
      %307 = vmatpush1.msra.mxu0 0.0
      %308 = vmatprep.subr.mxu0 0.0
      %309 = vmatpush1.msra.mxu0 0.0
      %310 = vmatprep.subr.mxu0 0.0
      %311 = vmatpush1.msra.mxu0 0.0
      %312 = vmatprep.subr.mxu0 0.0
      %313 = vmatpush1.msra.mxu0 0.0
      %314 = vmatprep.subr.mxu0 0.0
      %315 = vmatpush1.msra.mxu0 0.0
      %316 = vmatprep.subr.mxu0 0.0
      %317 = vmatpush1.msra.mxu0 0.0
      %318 = vmatprep.mubr.f32.mxu0 0.0
      %319 = vmatmul.mubr.f32.gmra.mrb[0].mxu0 %v252
      %v320 = vpop.f32.mrb[0].mxu0
      %v321 = vadd.f32 %v248, %v320
      %v322 = vpop.f32.mrb[0].mxu0
      %323 = vdwg.mxu0
      %324 = vst [vmem:[%s230] sm:$0xff] %v321
      %p325 = scmp.lt.s32.totalorder %s18, 8
      %s326 = scalar_select %p325, %s18, 8
      %p327 = scmp.lt.s32.totalorder %s19, 0
      %s328 = scalar_select %p327, %s19, 0
      %s329 = sadd.s32 %s328, %s326
      %s330 = smul.addr %s329, 8
      %s331 = scalar_lea.vmem %s3, %s330
      // Predicated region
      $region33: #{modifier_forward.1} parent=31 // pred_check
        %p332 = pneg %p126
      $region34: #{modifier_forward.1} parent=31 // pred_check_branch
        %334 = sbr.rel (%p332) target = $region36
      $region35: #{modifier_forward.1} parent=31 // pred_region
        _
      $region36: #{modifier_forward.1} parent=31 // pred_fallthru
        _
    $region32: #{modifier_forward.1} parent=5 // pred_fallthru
      _
    %p335 = scmp.le.s32.totalorder 2, %s9
    // Predicated region
    $region37: #{modifier_forward.1} parent=5 // pred_check
      %p336 = pneg %p335
    $region38: #{modifier_forward.1} parent=5 // pred_check_branch
      %338 = sbr.rel (%p336) target = $region40
    $region39: #{modifier_forward.1} parent=5 // pred_region
      %s339 = ssub.s32 %s9, 2
      // Predicated region
      $region41: #{modifier_forward.1} parent=39 // pred_check
        %p340 = pneg %p132
      $region42: #{modifier_forward.1} parent=39 // pred_check_branch
        %342 = sbr.rel (%p340) target = $region44
      $region43: #{modifier_forward.1} parent=39 // pred_region
        %p343 = scmp.lt.s32.totalorder %s20, 8
        %s344 = scalar_select %p343, %s20, 8
        %p345 = scmp.lt.s32.totalorder %s21, 0
        %s346 = scalar_select %p345, %s21, 0
        %s347 = sadd.s32 %s346, %s344
        %s348 = smul.addr %s347, 8
        %s349 = scalar_lea.vmem %s3, %s348
      $region44: #{modifier_forward.1} parent=39 // pred_fallthru
        _
    $region40: #{modifier_forward.1} parent=5 // pred_fallthru
      _
  $region6: #{modifier_forward.1} parent=0 // loop_footer
    %s13 = sadd.s32 1, %s9
  $region7: #{modifier_forward.1} parent=0 // loop_footer_branch
    %8 = sbr.rel target = $region3
  $region8: #{modifier_forward.1} parent=0 // loop_exit
    _

</llo_original>
